<compile_context>
chip_gen: v5e
topology: v5e:2x2
jax: 0.10.0
libtpu: 0.0.40
codegen_flags: <defaults>
</compile_context>

<pallas_src>
import jax
import jax.numpy as jnp
from jax.experimental import pallas as pl
from jax.experimental.pallas import tpu as pltpu


# ---------------------------------------------------------------------------
# Kernel
# ---------------------------------------------------------------------------

def _outconv_kernel(x_ref, w_ref, b_ref, o_ref):
    # x_ref: (1, Cin, TL)   w_ref: (Cout, Cin)   b_ref: (Cout, 1)
    # o_ref: (1, Cout, TL)
    # (Cout, Cin) @ (Cin, TL) -> (Cout, TL): L stays on the lane axis, so the
    # store is a full-width vst even for tiny Cout.  Cout underfills the MXU
    # M-dim, but this layer is HBM-bound so the MXU slot has plenty of slack.
    y = jnp.dot(w_ref[...], x_ref[0], preferred_element_type=jnp.float32)
    y = y + b_ref[...]                      # bias broadcast over lanes
    o_ref[0] = y.astype(o_ref.dtype)


# ---------------------------------------------------------------------------
# Wrapper
# ---------------------------------------------------------------------------

_VMEM_BUDGET_BYTES = 8 * 1024 * 1024   # conservative: fits every chip's default
_TL_HARD_CAP = 32768                   # sanity cap on lane-tile width


def _choose_l_tile(L, cin, cout):
    """Largest lane-aligned (multiple-of-128) tile of the length axis whose
    double-buffered in+out footprint fits the VMEM budget.  Prefers a tile
    that divides L exactly; otherwise relies on Pallas' masked ragged edge."""
    # f32 bytes per lane column, x2 for BlockSpec double buffering.
    bytes_per_lane = 4 * 2 * (cin + cout)
    cap = (_VMEM_BUDGET_BYTES // bytes_per_lane) // 128 * 128
    cap = max(128, min(cap, _TL_HARD_CAP))
    if L <= cap:
        return L
    # Prefer an exact divisor of L (no partial last block).
    t = cap
    while t >= 128:
        if L % t == 0:
            return t
        t -= 128
    # Fall back to ragged tiling; Pallas masks the final partial block.
    return cap


def outconv(x, weight, bias):
    """Conv1d(kernel_size=1): x (N, Cin, L), weight (Cout, Cin, 1), bias (Cout,)
    -> (N, Cout, L)."""
    N, Cin, L = x.shape
    Cout = weight.shape[0]
    w = weight.reshape(Cout, Cin).astype(jnp.float32)
    b = bias.reshape(Cout, 1).astype(jnp.float32)

    TL = _choose_l_tile(L, Cin, Cout)
    n_l = pl.cdiv(L, TL)

    return pl.pallas_call(
        _outconv_kernel,
        out_shape=jax.ShapeDtypeStruct((N, Cout, L), x.dtype),
        grid=(N, n_l),
        in_specs=[
            pl.BlockSpec((1, Cin, TL), lambda n, l: (n, 0, l)),
            pl.BlockSpec((Cout, Cin), lambda n, l: (0, 0)),   # resident weights
            pl.BlockSpec((Cout, 1), lambda n, l: (0, 0)),     # resident bias
        ],
        out_specs=pl.BlockSpec((1, Cout, TL), lambda n, l: (n, 0, l)),
        compiler_params=pltpu.CompilerParams(
            dimension_semantics=("parallel", "parallel"),
        ),
    )(x, w, b)


# ---------------------------------------------------------------------------
# Demo / self-check
# ---------------------------------------------------------------------------

if __name__ == "__main__":
    key = jax.random.PRNGKey(0)
    kx, kw, kb = jax.random.split(key, 3)

    # Shapes consistent with the UNet's outconv stage: 64 -> 2 channels.
    N, Cin, Cout, L = 2, 64, 2, 256

    x = jax.random.normal(kx, (N, Cin, L), jnp.float32)
    # PyTorch Conv1d parameter shapes: weight (out_ch, in_ch, 1), bias (out_ch,)
    weight = (1.0 / Cin) ** 0.5 * jax.random.normal(kw, (Cout, Cin, 1), jnp.float32)
    bias = 0.01 * jax.random.normal(kb, (Cout,), jnp.float32)

    fwd = jax.jit(outconv)
    out = jax.block_until_ready(fwd(x, weight, bias))
    assert out.shape == (N, Cout, L), out.shape

    # Reference: plain XLA pointwise conv in full precision.
    ref = jnp.einsum("oi,nil->nol", weight[:, :, 0], x,
                     precision=jax.lax.Precision.HIGHEST) + bias[None, :, None]
    assert bool(jnp.all(jnp.isfinite(out)))
    assert bool(jnp.allclose(out, ref, rtol=1e-2, atol=1e-2)), (
        float(jnp.max(jnp.abs(out - ref))))

    print("KERNEL_OK")
</pallas_src>

<mosaic_0001>
module attributes {stable_mosaic.version = 11 : i64} {
  func.func @_outconv_kernel(%arg0: i32, %arg1: i32, %arg2: memref<1x64x256xf32, #tpu.memory_space<vmem>>, %arg3: memref<2x64xf32, #tpu.memory_space<vmem>>, %arg4: memref<2x1xf32, #tpu.memory_space<vmem>>, %arg5: memref<1x2x256xf32, #tpu.memory_space<vmem>>) attributes {dimension_semantics = [#tpu.dimension_semantics<parallel>, #tpu.dimension_semantics<parallel>], iteration_bounds = array<i64: 2, 1>, scalar_prefetch = 0 : i64, scratch_operands = 0 : i64, tpu.core_type = #tpu.core_type<tc>, window_params = [{transform_indices = @transform_0, window_bounds = array<i64: 1, 64, 256>}, {pipeline_mode = #tpu.pipeline_mode<synchronous>, transform_indices = @transform_1, window_bounds = array<i64: 2, 64>}, {pipeline_mode = #tpu.pipeline_mode<synchronous>, transform_indices = @transform_2, window_bounds = array<i64: 2, 1>}, {transform_indices = @transform_3, window_bounds = array<i64: 1, 2, 256>}]} {
    %c0 = arith.constant 0 : index
    %c0_0 = arith.constant 0 : index
    %0 = vector.load %arg3[%c0, %c0_0] : memref<2x64xf32, #tpu.memory_space<vmem>>, vector<2x64xf32>
    %c0_1 = arith.constant 0 : index
    %c0_2 = arith.constant 0 : index
    %c0_3 = arith.constant 0 : index
    %1 = vector.load %arg2[%c0_1, %c0_2, %c0_3] : memref<1x64x256xf32, #tpu.memory_space<vmem>>, vector<1x64x256xf32>
    %2 = vector.shape_cast %1 : vector<1x64x256xf32> to vector<64x256xf32>
    %cst = arith.constant dense<0.000000e+00> : vector<2x256xf32>
    %3 = tpu.matmul %0, %2, %cst {dimension_numbers = #tpu.dot_dimension_numbers<[1], [0], [0], [1], [0, 0, 1, 1], [], []>} : vector<2x64xf32>, vector<64x256xf32>, vector<2x256xf32> -> vector<2x256xf32>
    %c0_4 = arith.constant 0 : index
    %c0_5 = arith.constant 0 : index
    %4 = vector.load %arg4[%c0_4, %c0_5] : memref<2x1xf32, #tpu.memory_space<vmem>>, vector<2x1xf32>
    %5 = vector.broadcast %4 : vector<2x1xf32> to vector<2x256xf32>
    %6 = arith.addf %3, %5 : vector<2x256xf32>
    %c0_6 = arith.constant 0 : index
    %c0_7 = arith.constant 0 : index
    %c0_8 = arith.constant 0 : index
    %7 = vector.load %arg5[%c0_6, %c0_7, %c0_8] : memref<1x2x256xf32, #tpu.memory_space<vmem>>, vector<1x2x256xf32>
    %8 = vector.shape_cast %7 : vector<1x2x256xf32> to vector<2x256xf32>
    %9 = vector.shape_cast %6 : vector<2x256xf32> to vector<1x2x256xf32>
    tpu.vector_store %arg5[%c0_6, %c0_7, %c0_8], %9 {strides = array<i32>} : memref<1x2x256xf32, #tpu.memory_space<vmem>>, vector<1x2x256xf32>,
    return
  }
  func.func @transform_0(%arg0: i32, %arg1: i32) -> (i32, i32, i32) {
    %c0_i32 = arith.constant 0 : i32
    %c0_i32_0 = arith.constant 0 : i32
    return %arg0, %c0_i32, %arg1 : i32, i32, i32
  }
  func.func @transform_1(%arg0: i32, %arg1: i32) -> (i32, i32) {
    %c0_i32 = arith.constant 0 : i32
    %c0_i32_0 = arith.constant 0 : i32
    %c0_i32_1 = arith.constant 0 : i32
    return %c0_i32, %c0_i32_0 : i32, i32
  }
  func.func @transform_2(%arg0: i32, %arg1: i32) -> (i32, i32) {
    %c0_i32 = arith.constant 0 : i32
    %c0_i32_0 = arith.constant 0 : i32
    %c0_i32_1 = arith.constant 0 : i32
    return %c0_i32, %c0_i32_0 : i32, i32
  }
  func.func @transform_3(%arg0: i32, %arg1: i32) -> (i32, i32, i32) {
    %c0_i32 = arith.constant 0 : i32
    %c0_i32_0 = arith.constant 0 : i32
    return %arg0, %c0_i32, %arg1 : i32, i32, i32
  }
}

</mosaic_0001>

<llo_original>
// kernel: outconv.1
$region0: #{outconv.1}
  #allocation0 [shape = 'u32[]', space=smem, size = 0x4, offset = 0x4, fixed_abs, tag = 'smem constant byte address 0x4 - core index']
  #allocation1 [shape = 'u32[72,128]{1,0:T(1,128)}', space=vmem, size = 0x9000, scoped, tag = 'internal scratch']
  %s0 = inlined_call_operand.hbm [shape: f32[2,64,256], index: 0, kind: input, shape index: {}]
  %s1 = inlined_call_operand.vmem [shape: f32[2,64], index: 1, kind: input, shape index: {}]
  %s2 = inlined_call_operand.vmem [shape: f32[2,1], index: 2, kind: input, shape index: {}]
  %s3 = inlined_call_operand.hbm [shape: f32[2,2,256], index: 3, kind: output, shape index: {}]
  %s4 = sld [smem:[#allocation0]]
  $region49: #{outconv.1} parent=0
    _
  %s6 = ssub.s32 1, %s4
  %s7 = scalar_select 0, %s6, %s4
  $region1: #{outconv.1} parent=0
    #allocation2 [shape = 'u8[131072]{0}', space=vmem, size = 0x20000, scoped, tag = 'input window, operand 0']
    #allocation3 [shape = 's32[2]{0}', space=sflag, size = 0x8, scoped, tag = 'scoped memory for outconv.1']
    #allocation4 [shape = 's32[2]{0}', space=sflag, size = 0x8, scoped, tag = 'scoped memory for outconv.1']
    #allocation5 [shape = 'u8[4096]{0}', space=vmem, size = 0x1000, scoped, tag = 'output window, operand 0']
    %8 = vsyncpa [#allocation3], 0
    %s9 = scalar_lea.sflag [#allocation3], 1
    %10 = vsyncpa %s9, 0
    %11 = vsyncpa [#allocation4], 0
    %s12 = scalar_lea.sflag [#allocation4], 1
    %13 = vsyncpa %s12, 0
    loop: start=0, step=1, limit=4
    $region2: #{outconv.1} parent=1 // loop_pre_header
      _
    $region3: #{outconv.1} parent=1 // loop_header
      %s15 = sphi 0, %s19
      %p16 = scmp.ge.s32.totalorder %s15, 4
      %s22 = sphi 0, %s34
      %s23 = sphi 0, %s30
      %s24 = sphi 0, %s22
      %s25 = sphi 0, %s23
      %s26 = sphi 0, %s24
      %s27 = sphi 0, %s25
      %s39 = sphi 0, %s41
      %s42 = sphi 0, %s39
      %s43 = sphi 0, %s42
      %s59 = sphi 0, %s43
      %s63 = sphi 0, %s63
      %s65 = sphi 0, %s63
      %s66 = sphi 0, %s65
      %s80 = sphi 0, %s66
      %s84 = sphi 0, %s84
      %s86 = sphi 0, %s84
      %s87 = sphi 0, %s86
      %s101 = sphi 0, %s87
      %s109 = sphi 0, %s111
      %s112 = sphi 0, %s109
      %s113 = sphi 0, %s112
      %s129 = sphi 0, %s113
    $region4: #{outconv.1} parent=1 // loop_header_branch
      %18 = sbr.rel (%p16) target = $region8
    $region5: #{outconv.1} parent=1 // loop_body
      %s20 = ssub.s32 %s15, 1
      %s21 = ssub.s32 %s15, 2
      %s28 = sadd.s32 1, %s23
      %p29 = scmp.ge.s32.totalorder %s28, 1
      %s30 = scalar_select %p29, 0, %s28
      %s31 = sadd.s32 1, %s22
      %s32 = scalar_select %p29, %s31, %s22
      %p33 = scmp.ge.s32.totalorder %s32, 2
      %s34 = scalar_select %p33, 0, %s32
      %s35 = ssub.s32 %s22, %s34
      %s36 = ssub.s32 %s23, %s30
      %s37 = sor.u32 %s35, %s36
      %p38 = scmp.eq.s32.totalorder %s37, 0
      %s40 = sadd.s32 %s39, 1
      %s41 = scalar_select %p38, %s39, %s40
      %p44 = pneg %p38
      %p45 = scmp.eq.s32.totalorder %s15, 1
      %p46 = por %p44, %p45
      %p47 = scmp.ne.s32.totalorder %s39, %s42
      %p48 = scmp.eq.s32.totalorder %s15, 0
      %p49 = por %p47, %p48
      %p50 = scmp.ne.s32.totalorder %s39, %s42
      %p51 = scmp.eq.s32.totalorder %s20, 1
      %p52 = por %p50, %p51
      %p53 = scmp.ne.s32.totalorder %s42, %s43
      %p54 = scmp.eq.s32.totalorder %s20, 0
      %p55 = por %p53, %p54
      %p56 = scmp.ne.s32.totalorder %s42, %s43
      %p57 = scmp.eq.s32.totalorder %s21, 1
      %p58 = por %p56, %p57
      %p60 = scmp.ne.s32.totalorder %s43, %s59
      %p61 = scmp.eq.s32.totalorder %s21, 0
      %p62 = por %p60, %p61
      %s64 = sadd.s32 %s63, 1
      %p67 = scmp.eq.s32.totalorder %s15, 1
      %p68 = scmp.ne.s32.totalorder %s63, %s65
      %p69 = scmp.eq.s32.totalorder %s15, 0
      %p70 = por %p68, %p69
      %p71 = scmp.ne.s32.totalorder %s63, %s65
      %p72 = scmp.eq.s32.totalorder %s20, 1
      %p73 = por %p71, %p72
      %p74 = scmp.ne.s32.totalorder %s65, %s66
      %p75 = scmp.eq.s32.totalorder %s20, 0
      %p76 = por %p74, %p75
      %p77 = scmp.ne.s32.totalorder %s65, %s66
      %p78 = scmp.eq.s32.totalorder %s21, 1
      %p79 = por %p77, %p78
      %p81 = scmp.ne.s32.totalorder %s66, %s80
      %p82 = scmp.eq.s32.totalorder %s21, 0
      %p83 = por %p81, %p82
      %s85 = sadd.s32 %s84, 1
      %p88 = scmp.eq.s32.totalorder %s15, 1
      %p89 = scmp.ne.s32.totalorder %s84, %s86
      %p90 = scmp.eq.s32.totalorder %s15, 0
      %p91 = por %p89, %p90
      %p92 = scmp.ne.s32.totalorder %s84, %s86
      %p93 = scmp.eq.s32.totalorder %s20, 1
      %p94 = por %p92, %p93
      %p95 = scmp.ne.s32.totalorder %s86, %s87
      %p96 = scmp.eq.s32.totalorder %s20, 0
      %p97 = por %p95, %p96
      %p98 = scmp.ne.s32.totalorder %s86, %s87
      %p99 = scmp.eq.s32.totalorder %s21, 1
      %p100 = por %p98, %p99
      %p102 = scmp.ne.s32.totalorder %s87, %s101
      %p103 = scmp.eq.s32.totalorder %s21, 0
      %p104 = por %p102, %p103
      %s105 = ssub.s32 %s22, %s34
      %s106 = ssub.s32 %s23, %s30
      %s107 = sor.u32 %s105, %s106
      %p108 = scmp.eq.s32.totalorder %s107, 0
      %s110 = sadd.s32 %s109, 1
      %s111 = scalar_select %p108, %s109, %s110
      %p114 = pneg %p108
      %p115 = scmp.eq.s32.totalorder %s15, 1
      %p116 = por %p114, %p115
      %p117 = scmp.ne.s32.totalorder %s109, %s112
      %p118 = scmp.eq.s32.totalorder %s15, 0
      %p119 = por %p117, %p118
      %p120 = scmp.ne.s32.totalorder %s109, %s112
      %p121 = scmp.eq.s32.totalorder %s20, 1
      %p122 = por %p120, %p121
      %p123 = scmp.ne.s32.totalorder %s112, %s113
      %p124 = scmp.eq.s32.totalorder %s20, 0
      %p125 = por %p123, %p124
      %p126 = scmp.ne.s32.totalorder %s112, %s113
      %p127 = scmp.eq.s32.totalorder %s21, 1
      %p128 = por %p126, %p127
      %p130 = scmp.ne.s32.totalorder %s113, %s129
      %p131 = scmp.eq.s32.totalorder %s21, 0
      %p132 = por %p130, %p131
      %p133 = scmp.le.s32.totalorder 1, %s15
      %p134 = scmp.lt.s32.totalorder %s15, 3
      %p135 = pnand %p133, %p134
      %p136 = pneg %p135
      // Predicated region
      $region9: #{outconv.1} parent=5 // pred_check
        _
      $region10: #{outconv.1} parent=5 // pred_check_branch
        %138 = sbr.rel (%p135) target = $region12
      $region11: #{outconv.1} parent=5 // pred_region
        %s139 = ssub.s32 %s15, 1
        // Predicated region
        $region13: #{outconv.1} parent=11 // pred_check
          %p140 = pneg %p76
        $region14: #{outconv.1} parent=11 // pred_check_branch
          %142 = sbr.rel (%p140) target = $region16
        $region15: #{outconv.1} parent=11 // pred_region
          _
        $region16: #{outconv.1} parent=11 // pred_fallthru
          _
        // Predicated region
        $region17: #{outconv.1} parent=11 // pred_check
          %p143 = pneg %p97
        $region18: #{outconv.1} parent=11 // pred_check_branch
          %145 = sbr.rel (%p143) target = $region20
        $region19: #{outconv.1} parent=11 // pred_region
          _
        $region20: #{outconv.1} parent=11 // pred_fallthru
          _
      $region12: #{outconv.1} parent=5 // pred_fallthru
        _
      %p146 = scmp.lt.s32.totalorder %s15, 2
      // Predicated region
      $region21: #{outconv.1} parent=5 // pred_check
        %p147 = pneg %p146
      $region22: #{outconv.1} parent=5 // pred_check_branch
        %149 = sbr.rel (%p147) target = $region24
      $region23: #{outconv.1} parent=5 // pred_region
        // Predicated region
        $region25: #{outconv.1} parent=23 // pred_check
          %p150 = pneg %p49
        $region26: #{outconv.1} parent=23 // pred_check_branch
          %152 = sbr.rel (%p150) target = $region28
        $region27: #{outconv.1} parent=23 // pred_region
          %s153 = sand.u32 %s39, 1
          %s154 = scalar_lea.sflag [#allocation3], %s153
          %s155 = sand.u32 %s39, 1
          %s156 = smul.addr %s155, 128
          %s157 = scalar_lea.vmem [#allocation2], %s156
          %s158 = smul.u32 2, %s23
          %160 = vsyncadd %s154, 0
          %s161 = smul.addr %s22, 16
          %s162 = sadd.s32 %s158, %s161
          %s163 = smul.addr %s162, 8
          %s164 = scalar_lea.hbm %s0, %s163
          %s165 = sshll.u32 %s164, 4
          %s166 = int_to_ptr.hbm [resolvable:$true] %s165
          %s167 = sshll.u32 %s157, 4
          %s168 = int_to_ptr.vmem [resolvable:$true] %s167
          %173 = dma.hbm_to_vmem [thread:$0]  %s166, 2048, %s168, %s154, 256, 256, 16
        $region28: #{outconv.1} parent=23 // pred_fallthru
          _
      $region24: #{outconv.1} parent=5 // pred_fallthru
        _
      %p174 = scmp.le.s32.totalorder 1, %s15
      %p175 = scmp.lt.s32.totalorder %s15, 3
      %p176 = pnand %p174, %p175
      %p177 = pneg %p176
      // Predicated region
      $region29: #{outconv.1} parent=5 // pred_check
        _
      $region30: #{outconv.1} parent=5 // pred_check_branch
        %179 = sbr.rel (%p176) target = $region32
      $region31: #{outconv.1} parent=5 // pred_region
        %s180 = ssub.s32 %s15, 1
        %s181 = sand.u32 %s42, 1
        %s182 = scalar_lea.sflag [#allocation3], %s181
        %s183 = sand.u32 %s42, 1
        %s184 = smul.addr %s183, 128
        %s185 = scalar_lea.vmem [#allocation2], %s184
        // Predicated region
        $region33: #{outconv.1} parent=31 // pred_check
          %p186 = pneg %p55
        $region34: #{outconv.1} parent=31 // pred_check_branch
          %188 = sbr.rel (%p186) target = $region36
        $region35: #{outconv.1} parent=31 // pred_region
          %190 = dma.done %s182, 2048
        $region36: #{outconv.1} parent=31 // pred_fallthru
          _
        %s191 = sand.u32 %s42, 1
        %s192 = scalar_lea.sflag [#allocation3], %s191
        %s193 = sand.u32 %s42, 1
        %s194 = smul.addr %s193, 128
        %s195 = scalar_lea.vmem [#allocation2], %s194
        %p196 = pneg %p55
        %p197 = pneg %p52
        %p198 = pneg %p76
        %p199 = pneg %p73
        %p200 = pneg %p97
        %p201 = pneg %p94
        %p202 = pneg %p125
        %p203 = pneg %p122
        %s204 = sand.u32 %s112, 1
        %s205 = scalar_lea.sflag [#allocation4], %s204
        %s206 = sand.u32 %s112, 1
        %s207 = smul.addr %s206, 4
        %s208 = scalar_lea.vmem [#allocation5], %s207
        %s209 = smul.u32 2, %s25
        %s210 = smul.u32 2, %s25
        %v211 = vld [vmem:[%s1] sm:$0x3]
        %v212 = vld [vmem:[%s185] sm:$0xff]
        %v213 = vld [vmem:[%s185 + $0x8] sm:$0xff]
        %v214 = vld [vmem:[%s185 + $0x10] sm:$0xff]
        %v215 = vld [vmem:[%s185 + $0x18] sm:$0xff]
        %v216 = vld [vmem:[%s185 + $0x20] sm:$0xff]
        %v217 = vld [vmem:[%s185 + $0x28] sm:$0xff]
        %v218 = vld [vmem:[%s185 + $0x30] sm:$0xff]
        %v219 = vld [vmem:[%s185 + $0x38] sm:$0xff]
        %v220 = vld [vmem:[%s185 + $0x40] sm:$0xff]
        %v221 = vld [vmem:[%s185 + $0x48] sm:$0xff]
        %v222 = vld [vmem:[%s185 + $0x50] sm:$0xff]
        %v223 = vld [vmem:[%s185 + $0x58] sm:$0xff]
        %v224 = vld [vmem:[%s185 + $0x60] sm:$0xff]
        %v225 = vld [vmem:[%s185 + $0x68] sm:$0xff]
        %v226 = vld [vmem:[%s185 + $0x70] sm:$0xff]
        %v227 = vld [vmem:[%s185 + $0x78] sm:$0xff]
        %v228 = vld [vmem:[%s2] sm:$0x3]
        %230 = vset.pattern.permute.xlu0 0
        %231 = vperm.xlu0 %230, %v228
        %v232 = vpop.permute.xlu0 %231
        %vm234 = vcmask 523264
        %v236 = vsel %vm234, %v211, 0
        %238 = vmatpush.msra.mxu0 0.0
        %239 = vmatpush.msra.mxu0 0.0
        %240 = vmatpush.msra.mxu0 0.0
        %241 = vmatpush.msra.mxu0 0.0
        %242 = vmatpush.msra.mxu0 0.0
        %243 = vmatpush.msra.mxu0 0.0
        %244 = vmatpush.msra.mxu0 0.0
        %245 = vmatpush.msra.mxu0 0.0
        %246 = vmatpush.msra.mxu0 %v226
        %247 = vmatpush.msra.mxu0 %v224
        %248 = vmatpush.msra.mxu0 %v222
        %249 = vmatpush.msra.mxu0 %v220
        %250 = vmatpush.msra.mxu0 %v218
        %251 = vmatpush.msra.mxu0 %v216
        %252 = vmatpush.msra.mxu0 %v214
        %253 = vmatpush.msra.mxu0 %v212
        %254 = vmatmul.f32.gmra.mxu0 %v236
        %v255 = vpop.f32.mrf.mxu0
        %v256 = vadd.f32 %v232, %v255
        %257 = vdwg.mxu0
        %258 = vmatpush.msra.mxu0 0.0
        %259 = vmatpush.msra.mxu0 0.0
        %260 = vmatpush.msra.mxu0 0.0
        %261 = vmatpush.msra.mxu0 0.0
        %262 = vmatpush.msra.mxu0 0.0
        %263 = vmatpush.msra.mxu0 0.0
        %264 = vmatpush.msra.mxu0 0.0
        %265 = vmatpush.msra.mxu0 0.0
        %266 = vmatpush.msra.mxu0 %v227
        %267 = vmatpush.msra.mxu0 %v225
        %268 = vmatpush.msra.mxu0 %v223
        %269 = vmatpush.msra.mxu0 %v221
        %270 = vmatpush.msra.mxu0 %v219
        %271 = vmatpush.msra.mxu0 %v217
        %272 = vmatpush.msra.mxu0 %v215
        %273 = vmatpush.msra.mxu0 %v213
        %274 = vmatmul.f32.gmra.mxu0 %v236
        %v275 = vpop.f32.mrf.mxu0
        %v276 = vadd.f32 %v232, %v275
        %277 = vdwg.mxu0
        %v280 = vrot.slane %v276, 6
        %vm281 = vcmask 1041408
        %v282 = vsel %vm281, %v256, %v280
        %284 = vst [vmem:[%s208] sm:$0xf] %v282
        %s285 = sand.u32 %s112, 1
        %s286 = scalar_lea.sflag [#allocation4], %s285
        %s287 = sand.u32 %s112, 1
        %s288 = smul.addr %s287, 4
        %s289 = scalar_lea.vmem [#allocation5], %s288
        // Predicated region
        $region37: #{outconv.1} parent=31 // pred_check
          %p290 = pneg %p122
        $region38: #{outconv.1} parent=31 // pred_check_branch
          %292 = sbr.rel (%p290) target = $region40
        $region39: #{outconv.1} parent=31 // pred_region
          %s293 = smul.u32 2, %s25
          %295 = vsyncadd %s286, 0
          %s296 = smul.addr %s24, 2
          %s297 = sadd.s32 %s293, %s296
          %s298 = smul.addr %s297, 2
          %s299 = scalar_lea.hbm %s3, %s298
          %s301 = sshll.u32 %s289, 4
          %s302 = int_to_ptr.vmem [resolvable:$true] %s301
          %s303 = sshll.u32 %s299, 4
          %s304 = int_to_ptr.hbm [resolvable:$true] %s303
          %306 = dma.vmem_to_hbm [thread:$0]  %s302, 64, %s304, %s286
        $region40: #{outconv.1} parent=31 // pred_fallthru
          _
      $region32: #{outconv.1} parent=5 // pred_fallthru
        _
      %p307 = scmp.le.s32.totalorder 2, %s15
      // Predicated region
      $region41: #{outconv.1} parent=5 // pred_check
        %p308 = pneg %p307
      $region42: #{outconv.1} parent=5 // pred_check_branch
        %310 = sbr.rel (%p308) target = $region44
      $region43: #{outconv.1} parent=5 // pred_region
        %s311 = ssub.s32 %s15, 2
        // Predicated region
        $region45: #{outconv.1} parent=43 // pred_check
          %p312 = pneg %p128
        $region46: #{outconv.1} parent=43 // pred_check_branch
          %314 = sbr.rel (%p312) target = $region48
        $region47: #{outconv.1} parent=43 // pred_region
          %s315 = sand.u32 %s113, 1
          %s316 = scalar_lea.sflag [#allocation4], %s315
          %s317 = sand.u32 %s113, 1
          %s318 = smul.addr %s317, 4
          %s319 = scalar_lea.vmem [#allocation5], %s318
          %321 = dma.done %s316, 64
        $region48: #{outconv.1} parent=43 // pred_fallthru
          _
      $region44: #{outconv.1} parent=5 // pred_fallthru
        _
    $region6: #{outconv.1} parent=1 // loop_footer
      %s19 = sadd.s32 1, %s15
    $region7: #{outconv.1} parent=1 // loop_footer_branch
      %14 = sbr.rel target = $region3
    $region8: #{outconv.1} parent=1 // loop_exit
      _
    %322 = vsyncpa [#allocation3], 1
    %s323 = scalar_lea.sflag [#allocation3], 1
    %324 = vsyncpa %s323, 1
    %325 = vsyncpa [#allocation4], 1
    %s326 = scalar_lea.sflag [#allocation4], 1
    %327 = vsyncpa %s326, 1

</llo_original>
